<compile_context>
chip_gen: v6e
topology: v6e:2x2x1
jax: 0.10.0
libtpu: 0.0.40
codegen_flags: <defaults>
</compile_context>

<pallas_src>
import functools

import jax
import jax.numpy as jnp
from jax.experimental import pallas as pl
from jax.experimental.pallas import tpu as pltpu


HIDDEN = 256
OUT_PAD = 8  # fc3 (N=1) padded to 8 output lanes; column 0 carries the result


def _round_up(n, m):
    return ((n + m - 1) // m) * m


def _cdiv(a, b):
    return (a + b - 1) // b


def qnet_kernel(x_ref, a_ref, w1x_ref, w1a_ref, b1_ref, w2_ref, b2_ref,
                w3_ref, b3_ref, out_ref):
    """Fused 3-layer MLP for one batch tile.

    x_ref : (TB, obs_dim) f32       w1x_ref: (obs_dim, 256) bf16
    a_ref : (TB, act_dim) f32       w1a_ref: (act_dim, 256) bf16
    b1/b2 : (1, 256) f32            w2_ref : (256, 256) bf16
    w3_ref: (256, 8) bf16 (cols 1..7 zero)   b3_ref: (1, 8) f32
    out_ref: (TB, 8) f32 (only column 0 meaningful)
    """
    # In-kernel f32 -> bf16 cast of the activations (VPU, hidden under MXU).
    x = x_ref[...].astype(jnp.bfloat16)
    a = a_ref[...].astype(jnp.bfloat16)

    # Layer 1: concat(x, a) @ W1 expressed as two dots on the split weight.
    h1 = jnp.dot(x, w1x_ref[...], preferred_element_type=jnp.float32)
    h1 = h1 + jnp.dot(a, w1a_ref[...], preferred_element_type=jnp.float32)
    h1 = jnp.maximum(h1 + b1_ref[...], 0.0).astype(jnp.bfloat16)     # (TB, 256)

    # Layer 2.
    h2 = jnp.dot(h1, w2_ref[...], preferred_element_type=jnp.float32)
    h2 = jnp.maximum(h2 + b2_ref[...], 0.0).astype(jnp.bfloat16)     # (TB, 256)

    # Layer 3 (padded to 8 output columns; narrow masked store is cheap).
    out = jnp.dot(h2, w3_ref[...], preferred_element_type=jnp.float32)
    out_ref[...] = out + b3_ref[...]                                  # (TB, 8)


def prepare_params(params, obs_dim):
    """One-time weight preprocessing (do this OUTSIDE the hot path).

    Splits W1 into (obs, act) halves, casts matmul operands to bf16 and pads
    the N=1 fc3 layer to OUT_PAD output columns (padded columns are zero).
    """
    w1, b1, w2, b2, w3, b3 = params
    w1x = w1[:obs_dim].astype(jnp.bfloat16)                 # (obs_dim, 256)
    w1a = w1[obs_dim:].astype(jnp.bfloat16)                 # (act_dim, 256)
    w2b = w2.astype(jnp.bfloat16)                           # (256, 256)
    w3p = jnp.pad(w3, ((0, 0), (0, OUT_PAD - w3.shape[1]))).astype(jnp.bfloat16)
    b3p = jnp.pad(b3, ((0, 0), (0, OUT_PAD - b3.shape[1]))).astype(jnp.float32)
    return (w1x, w1a, b1.astype(jnp.float32), w2b, b2.astype(jnp.float32),
            w3p, b3p)


@functools.partial(jax.jit, static_argnames=("tb_max",))
def qnetwork_forward(x, a, prepared, *, tb_max=1024):
    """x: (B, obs_dim) f32, a: (B, act_dim) f32; returns (B, 1) f32."""
    B, obs_dim = x.shape
    act_dim = a.shape[1]
    w1x, w1a, b1, w2, b2, w3, b3 = prepared

    # ---- Batch tile selection (all static Python ints at trace time). ----
    B8 = _round_up(B, 8)                       # sublane alignment
    n_tiles = max(_cdiv(B8, tb_max), 1)
    if B8 >= 16 and n_tiles < 2:
        n_tiles = 2                            # >=2 grid steps -> v7x megacore
    TB = _round_up(_cdiv(B8, n_tiles), 8)      # fat tiles, bounded pad waste
    B_pad = n_tiles * TB

    if B_pad != B:
        x = jnp.pad(x, ((0, B_pad - B), (0, 0)))
        a = jnp.pad(a, ((0, B_pad - B), (0, 0)))

    # ---- Cost estimate (kernel is launch/HBM bound; help XLA schedule). ----
    flops = 2 * B_pad * ((obs_dim + act_dim) * HIDDEN
                         + HIDDEN * HIDDEN + HIDDEN * OUT_PAD)
    bytes_accessed = (B_pad * (obs_dim + act_dim) * 4            # x, a (f32)
                      + ((obs_dim + act_dim) * HIDDEN
                         + HIDDEN * HIDDEN + HIDDEN * OUT_PAD) * 2  # bf16 W
                      + (2 * HIDDEN + OUT_PAD) * 4               # biases
                      + B_pad * OUT_PAD * 4)                     # output
    cost = pl.CostEstimate(flops=flops, transcendentals=0,
                           bytes_accessed=bytes_accessed)

    # Batch-tiled activations; weights/biases resident (same block every step,
    # so the pipeline fetches them once).
    resident = lambda shape: pl.BlockSpec(shape, lambda i: (0, 0))
    out = pl.pallas_call(
        qnet_kernel,
        out_shape=jax.ShapeDtypeStruct((B_pad, OUT_PAD), jnp.float32),
        grid=(n_tiles,),
        in_specs=[
            pl.BlockSpec((TB, obs_dim), lambda i: (i, 0)),   # x tile
            pl.BlockSpec((TB, act_dim), lambda i: (i, 0)),   # a tile
            resident((obs_dim, HIDDEN)),                     # W1x
            resident((act_dim, HIDDEN)),                     # W1a
            resident((1, HIDDEN)),                           # b1
            resident((HIDDEN, HIDDEN)),                      # W2
            resident((1, HIDDEN)),                           # b2
            resident((HIDDEN, OUT_PAD)),                     # W3 (padded)
            resident((1, OUT_PAD)),                          # b3 (padded)
        ],
        out_specs=pl.BlockSpec((TB, OUT_PAD), lambda i: (i, 0)),
        compiler_params=pltpu.CompilerParams(
            dimension_semantics=("parallel",),
            vmem_limit_bytes=32 * 1024 * 1024,
        ),
        cost_estimate=cost,
    )(x, a, w1x, w1a, b1, w2, b2, w3, b3)

    return out[:B, :1]


def init_params(key, obs_dim, act_dim):
    """Deterministic init mirroring nn.Linear default (uniform +-1/sqrt(fan_in)).

    Weights are stored transposed relative to PyTorch ((in, out)) so the
    kernel does plain row-major x @ W. Stored in f32; preprocessed once by
    prepare_params().
    """
    d_in = obs_dim + act_dim
    ks = jax.random.split(key, 6)

    def lin(kw, kb, fan_in, fan_out):
        bound = 1.0 / jnp.sqrt(jnp.float32(fan_in))
        w = jax.random.uniform(kw, (fan_in, fan_out), jnp.float32, -bound, bound)
        b = jax.random.uniform(kb, (1, fan_out), jnp.float32, -bound, bound)
        return w, b

    w1, b1 = lin(ks[0], ks[1], d_in, HIDDEN)
    w2, b2 = lin(ks[2], ks[3], HIDDEN, HIDDEN)
    w3, b3 = lin(ks[4], ks[5], HIDDEN, 1)
    return (w1, b1, w2, b2, w3, b3)


def _reference_forward(x, a, params):
    """Pure-JAX reference replicating the kernel's bf16-operand dots."""
    w1, b1, w2, b2, w3, b3 = params
    bf = jnp.bfloat16
    xa = jnp.concatenate([x, a], axis=1)
    h1 = jnp.dot(xa.astype(bf), w1.astype(bf),
                 preferred_element_type=jnp.float32) + b1
    h1 = jnp.maximum(h1, 0.0)
    h2 = jnp.dot(h1.astype(bf), w2.astype(bf),
                 preferred_element_type=jnp.float32) + b2
    h2 = jnp.maximum(h2, 0.0)
    return jnp.dot(h2.astype(bf), w3.astype(bf),
                   preferred_element_type=jnp.float32) + b3


if __name__ == "__main__":
    key = jax.random.PRNGKey(0)
    k_x, k_a, k_p = jax.random.split(key, 3)

    batch, obs_dim, act_dim = 2, 16, 4
    x = jax.random.normal(k_x, (batch, obs_dim), jnp.float32)
    a = jax.random.normal(k_a, (batch, act_dim), jnp.float32)
    params = init_params(k_p, obs_dim, act_dim)

    # One-time weight preprocessing (cached across forward calls).
    prepared = jax.tree.map(jax.block_until_ready,
                            prepare_params(params, obs_dim))

    q = qnetwork_forward(x, a, prepared)
    jax.block_until_ready(q)

    ref = _reference_forward(x, a, params)
    assert q.shape == (batch, 1), q.shape
    assert jnp.allclose(q, ref, atol=1e-3, rtol=1e-3), (q, ref)

    print("KERNEL_OK")
</pallas_src>

<mosaic_0001>
module attributes {stable_mosaic.version = 11 : i64} {
  func.func @qnet_kernel(%arg0: i32, %arg1: memref<8x16xf32, #tpu.memory_space<vmem>>, %arg2: memref<8x4xf32, #tpu.memory_space<vmem>>, %arg3: memref<16x256xbf16, #tpu.memory_space<vmem>>, %arg4: memref<4x256xbf16, #tpu.memory_space<vmem>>, %arg5: memref<1x256xf32, #tpu.memory_space<vmem>>, %arg6: memref<256x256xbf16, #tpu.memory_space<vmem>>, %arg7: memref<1x256xf32, #tpu.memory_space<vmem>>, %arg8: memref<256x8xbf16, #tpu.memory_space<vmem>>, %arg9: memref<1x8xf32, #tpu.memory_space<vmem>>, %arg10: memref<8x8xf32, #tpu.memory_space<vmem>>) attributes {dimension_semantics = [#tpu.dimension_semantics<parallel>], iteration_bounds = array<i64: 1>, scalar_prefetch = 0 : i64, scratch_operands = 0 : i64, tpu.core_type = #tpu.core_type<tc>, window_params = [{transform_indices = @transform_0, window_bounds = array<i64: 8, 16>}, {transform_indices = @transform_1, window_bounds = array<i64: 8, 4>}, {pipeline_mode = #tpu.pipeline_mode<synchronous>, transform_indices = @transform_2, window_bounds = array<i64: 16, 256>}, {pipeline_mode = #tpu.pipeline_mode<synchronous>, transform_indices = @transform_3, window_bounds = array<i64: 4, 256>}, {pipeline_mode = #tpu.pipeline_mode<synchronous>, transform_indices = @transform_4, window_bounds = array<i64: 1, 256>}, {pipeline_mode = #tpu.pipeline_mode<synchronous>, transform_indices = @transform_5, window_bounds = array<i64: 256, 256>}, {pipeline_mode = #tpu.pipeline_mode<synchronous>, transform_indices = @transform_6, window_bounds = array<i64: 1, 256>}, {pipeline_mode = #tpu.pipeline_mode<synchronous>, transform_indices = @transform_7, window_bounds = array<i64: 256, 8>}, {pipeline_mode = #tpu.pipeline_mode<synchronous>, transform_indices = @transform_8, window_bounds = array<i64: 1, 8>}, {transform_indices = @transform_9, window_bounds = array<i64: 8, 8>}]} {
    %c0 = arith.constant 0 : index
    %c0_0 = arith.constant 0 : index
    %0 = vector.load %arg1[%c0, %c0_0] : memref<8x16xf32, #tpu.memory_space<vmem>>, vector<8x16xf32>
    %1 = arith.truncf %0 : vector<8x16xf32> to vector<8x16xbf16>
    %c0_1 = arith.constant 0 : index
    %c0_2 = arith.constant 0 : index
    %2 = vector.load %arg2[%c0_1, %c0_2] : memref<8x4xf32, #tpu.memory_space<vmem>>, vector<8x4xf32>
    %3 = arith.truncf %2 : vector<8x4xf32> to vector<8x4xbf16>
    %c0_3 = arith.constant 0 : index
    %c0_4 = arith.constant 0 : index
    %4 = vector.load %arg3[%c0_3, %c0_4] : memref<16x256xbf16, #tpu.memory_space<vmem>>, vector<16x256xbf16>
    %cst = arith.constant dense<0.000000e+00> : vector<8x256xf32>
    %5 = tpu.matmul %1, %4, %cst {dimension_numbers = #tpu.dot_dimension_numbers<[1], [0], [0], [1], [0, 0, 1, 1], [], []>} : vector<8x16xbf16>, vector<16x256xbf16>, vector<8x256xf32> -> vector<8x256xf32>
    %c0_5 = arith.constant 0 : index
    %c0_6 = arith.constant 0 : index
    %6 = vector.load %arg4[%c0_5, %c0_6] : memref<4x256xbf16, #tpu.memory_space<vmem>>, vector<4x256xbf16>
    %cst_7 = arith.constant dense<0.000000e+00> : vector<8x256xf32>
    %7 = tpu.matmul %3, %6, %cst_7 {dimension_numbers = #tpu.dot_dimension_numbers<[1], [0], [0], [1], [0, 0, 1, 1], [], []>} : vector<8x4xbf16>, vector<4x256xbf16>, vector<8x256xf32> -> vector<8x256xf32>
    %8 = arith.addf %5, %7 : vector<8x256xf32>
    %c0_8 = arith.constant 0 : index
    %c0_9 = arith.constant 0 : index
    %9 = vector.load %arg5[%c0_8, %c0_9] : memref<1x256xf32, #tpu.memory_space<vmem>>, vector<1x256xf32>
    %10 = vector.broadcast %9 : vector<1x256xf32> to vector<8x256xf32>
    %11 = arith.addf %8, %10 : vector<8x256xf32>
    %cst_10 = arith.constant 0.000000e+00 : f32
    %12 = vector.broadcast %cst_10 : f32 to vector<8x256xf32>
    %13 = arith.maximumf %11, %12 : vector<8x256xf32>
    %14 = arith.truncf %13 : vector<8x256xf32> to vector<8x256xbf16>
    %c0_11 = arith.constant 0 : index
    %c0_12 = arith.constant 0 : index
    %15 = vector.load %arg6[%c0_11, %c0_12] : memref<256x256xbf16, #tpu.memory_space<vmem>>, vector<256x256xbf16>
    %cst_13 = arith.constant dense<0.000000e+00> : vector<8x256xf32>
    %16 = tpu.matmul %14, %15, %cst_13 {dimension_numbers = #tpu.dot_dimension_numbers<[1], [0], [0], [1], [0, 0, 1, 1], [], []>} : vector<8x256xbf16>, vector<256x256xbf16>, vector<8x256xf32> -> vector<8x256xf32>
    %c0_14 = arith.constant 0 : index
    %c0_15 = arith.constant 0 : index
    %17 = vector.load %arg7[%c0_14, %c0_15] : memref<1x256xf32, #tpu.memory_space<vmem>>, vector<1x256xf32>
    %18 = vector.broadcast %17 : vector<1x256xf32> to vector<8x256xf32>
    %19 = arith.addf %16, %18 : vector<8x256xf32>
    %cst_16 = arith.constant 0.000000e+00 : f32
    %20 = vector.broadcast %cst_16 : f32 to vector<8x256xf32>
    %21 = arith.maximumf %19, %20 : vector<8x256xf32>
    %22 = arith.truncf %21 : vector<8x256xf32> to vector<8x256xbf16>
    %c0_17 = arith.constant 0 : index
    %c0_18 = arith.constant 0 : index
    %23 = vector.load %arg8[%c0_17, %c0_18] : memref<256x8xbf16, #tpu.memory_space<vmem>>, vector<256x8xbf16>
    %cst_19 = arith.constant dense<0.000000e+00> : vector<8x8xf32>
    %24 = tpu.matmul %22, %23, %cst_19 {dimension_numbers = #tpu.dot_dimension_numbers<[1], [0], [0], [1], [0, 0, 1, 1], [], []>} : vector<8x256xbf16>, vector<256x8xbf16>, vector<8x8xf32> -> vector<8x8xf32>
    %c0_20 = arith.constant 0 : index
    %c0_21 = arith.constant 0 : index
    %25 = vector.load %arg9[%c0_20, %c0_21] : memref<1x8xf32, #tpu.memory_space<vmem>>, vector<1x8xf32>
    %26 = vector.broadcast %25 : vector<1x8xf32> to vector<8x8xf32>
    %27 = arith.addf %24, %26 : vector<8x8xf32>
    %c0_22 = arith.constant 0 : index
    %c0_23 = arith.constant 0 : index
    %28 = vector.load %arg10[%c0_22, %c0_23] : memref<8x8xf32, #tpu.memory_space<vmem>>, vector<8x8xf32>
    tpu.vector_store %arg10[%c0_22, %c0_23], %27 {strides = array<i32>} : memref<8x8xf32, #tpu.memory_space<vmem>>, vector<8x8xf32>,
    return
  }
  func.func @transform_0(%arg0: i32) -> (i32, i32) {
    %c0_i32 = arith.constant 0 : i32
    %c0_i32_0 = arith.constant 0 : i32
    return %arg0, %c0_i32 : i32, i32
  }
  func.func @transform_1(%arg0: i32) -> (i32, i32) {
    %c0_i32 = arith.constant 0 : i32
    %c0_i32_0 = arith.constant 0 : i32
    return %arg0, %c0_i32 : i32, i32
  }
  func.func @transform_2(%arg0: i32) -> (i32, i32) {
    %c0_i32 = arith.constant 0 : i32
    %c0_i32_0 = arith.constant 0 : i32
    %c0_i32_1 = arith.constant 0 : i32
    return %c0_i32, %c0_i32_0 : i32, i32
  }
  func.func @transform_3(%arg0: i32) -> (i32, i32) {
    %c0_i32 = arith.constant 0 : i32
    %c0_i32_0 = arith.constant 0 : i32
    %c0_i32_1 = arith.constant 0 : i32
    return %c0_i32, %c0_i32_0 : i32, i32
  }
  func.func @transform_4(%arg0: i32) -> (i32, i32) {
    %c0_i32 = arith.constant 0 : i32
    %c0_i32_0 = arith.constant 0 : i32
    %c0_i32_1 = arith.constant 0 : i32
    return %c0_i32, %c0_i32_0 : i32, i32
  }
  func.func @transform_5(%arg0: i32) -> (i32, i32) {
    %c0_i32 = arith.constant 0 : i32
    %c0_i32_0 = arith.constant 0 : i32
    %c0_i32_1 = arith.constant 0 : i32
    return %c0_i32, %c0_i32_0 : i32, i32
  }
  func.func @transform_6(%arg0: i32) -> (i32, i32) {
    %c0_i32 = arith.constant 0 : i32
    %c0_i32_0 = arith.constant 0 : i32
    %c0_i32_1 = arith.constant 0 : i32
    return %c0_i32, %c0_i32_0 : i32, i32
  }
  func.func @transform_7(%arg0: i32) -> (i32, i32) {
    %c0_i32 = arith.constant 0 : i32
    %c0_i32_0 = arith.constant 0 : i32
    %c0_i32_1 = arith.constant 0 : i32
    return %c0_i32, %c0_i32_0 : i32, i32
  }
  func.func @transform_8(%arg0: i32) -> (i32, i32) {
    %c0_i32 = arith.constant 0 : i32
    %c0_i32_0 = arith.constant 0 : i32
    %c0_i32_1 = arith.constant 0 : i32
    return %c0_i32, %c0_i32_0 : i32, i32
  }
  func.func @transform_9(%arg0: i32) -> (i32, i32) {
    %c0_i32 = arith.constant 0 : i32
    %c0_i32_0 = arith.constant 0 : i32
    return %arg0, %c0_i32 : i32, i32
  }
}

</mosaic_0001>

<llo_original>
// kernel: qnetwork_forward.1
$region0: #{qnetwork_forward.1}
  #allocation0 [shape = 'u32[]', space=smem, size = 0x4, offset = 0x4, fixed_abs, tag = 'smem constant byte address 0x4 - core index']
  #allocation1 [shape = 'u32[144,128]{1,0:T(1,128)}', space=vmem, size = 0x12000, scoped, tag = 'internal scratch']
  %s0 = inlined_call_operand.vmem [shape: f32[8,16], index: 0, kind: input, shape index: {}]
  %s1 = inlined_call_operand.vmem [shape: f32[8,4], index: 1, kind: input, shape index: {}]
  %s2 = inlined_call_operand.vmem [shape: bf16[16,256], index: 2, kind: input, shape index: {}]
  %s3 = inlined_call_operand.vmem [shape: bf16[4,256], index: 3, kind: input, shape index: {}]
  %s4 = inlined_call_operand.vmem [shape: f32[1,256], index: 4, kind: input, shape index: {}]
  %s5 = inlined_call_operand.hbm [shape: bf16[256,256], index: 5, kind: input, shape index: {}]
  %s6 = inlined_call_operand.vmem [shape: f32[1,256], index: 6, kind: input, shape index: {}]
  %s7 = inlined_call_operand.vmem [shape: bf16[256,8], index: 7, kind: input, shape index: {}]
  %s8 = inlined_call_operand.vmem [shape: f32[1,8], index: 8, kind: input, shape index: {}]
  %s9 = inlined_call_operand.vmem [shape: f32[8,8], index: 9, kind: output, shape index: {}]
  %s10 = sld [smem:[#allocation0]]
  $region50: #{qnetwork_forward.1} parent=0
    _
  %s12 = ssub.s32 1, %s10
  %s13 = scalar_select 0, %s12, %s10
  $region1: #{qnetwork_forward.1} parent=0
    #allocation2 [shape = 'u8[131072]{0}', space=vmem, size = 0x20000, scoped, tag = 'input window, operand 5, single buffered']
    #allocation3 [shape = 's32[1]{0}', space=sflag, size = 0x4, scoped, tag = 'scoped memory for qnetwork_forward.1']
    %14 = vsyncpa [#allocation3], 0
    // Predicated region
    $region2: #{qnetwork_forward.1} parent=1 // pred_check
      _
    $region3: #{qnetwork_forward.1} parent=1 // pred_check_branch
      %16 = sbr.rel (0) target = $region5
    $region4: #{qnetwork_forward.1} parent=1 // pred_region
      _
    $region5: #{qnetwork_forward.1} parent=1 // pred_fallthru
      _
    // Predicated region
    $region6: #{qnetwork_forward.1} parent=1 // pred_check
      _
    $region7: #{qnetwork_forward.1} parent=1 // pred_check_branch
      %18 = sbr.rel (0) target = $region9
    $region8: #{qnetwork_forward.1} parent=1 // pred_region
      _
    $region9: #{qnetwork_forward.1} parent=1 // pred_fallthru
      _
    // Predicated region
    $region10: #{qnetwork_forward.1} parent=1 // pred_check
      _
    $region11: #{qnetwork_forward.1} parent=1 // pred_check_branch
      %20 = sbr.rel (0) target = $region13
    $region12: #{qnetwork_forward.1} parent=1 // pred_region
      _
    $region13: #{qnetwork_forward.1} parent=1 // pred_fallthru
      _
    // Predicated region
    $region14: #{qnetwork_forward.1} parent=1 // pred_check
      _
    $region15: #{qnetwork_forward.1} parent=1 // pred_check_branch
      %22 = sbr.rel (0) target = $region17
    $region16: #{qnetwork_forward.1} parent=1 // pred_region
      _
    $region17: #{qnetwork_forward.1} parent=1 // pred_fallthru
      _
    // Predicated region
    $region18: #{qnetwork_forward.1} parent=1 // pred_check
      _
    $region19: #{qnetwork_forward.1} parent=1 // pred_check_branch
      %24 = sbr.rel (0) target = $region21
    $region20: #{qnetwork_forward.1} parent=1 // pred_region
      _
    $region21: #{qnetwork_forward.1} parent=1 // pred_fallthru
      _
    // Predicated region
    $region22: #{qnetwork_forward.1} parent=1 // pred_check
      _
    $region23: #{qnetwork_forward.1} parent=1 // pred_check_branch
      %26 = sbr.rel (0) target = $region25
    $region24: #{qnetwork_forward.1} parent=1 // pred_region
      %s28 = ssub.s32 4096, 4096
      %29 = vsyncadd [#allocation3], %s28
      %s30 = sshll.u32 [#allocation2], 4
      %s31 = int_to_ptr.vmem [resolvable:$true] %s30
      %36 = dma.hbm_to_vmem [thread:$0]  %s5, 4096, %s31, [#allocation3], 128, 128, 8
    $region25: #{qnetwork_forward.1} parent=1 // pred_fallthru
      _
    // Predicated region
    $region26: #{qnetwork_forward.1} parent=1 // pred_check
      _
    $region27: #{qnetwork_forward.1} parent=1 // pred_check_branch
      %38 = sbr.rel (0) target = $region29
    $region28: #{qnetwork_forward.1} parent=1 // pred_region
      _
    $region29: #{qnetwork_forward.1} parent=1 // pred_fallthru
      _
    // Predicated region
    $region30: #{qnetwork_forward.1} parent=1 // pred_check
      _
    $region31: #{qnetwork_forward.1} parent=1 // pred_check_branch
      %40 = sbr.rel (0) target = $region33
    $region32: #{qnetwork_forward.1} parent=1 // pred_region
      _
    $region33: #{qnetwork_forward.1} parent=1 // pred_fallthru
      _
    // Predicated region
    $region34: #{qnetwork_forward.1} parent=1 // pred_check
      _
    $region35: #{qnetwork_forward.1} parent=1 // pred_check_branch
      %42 = sbr.rel (0) target = $region37
    $region36: #{qnetwork_forward.1} parent=1 // pred_region
      _
    $region37: #{qnetwork_forward.1} parent=1 // pred_fallthru
      _
    // Predicated region
    $region38: #{qnetwork_forward.1} parent=1 // pred_check
      _
    $region39: #{qnetwork_forward.1} parent=1 // pred_check_branch
      %44 = sbr.rel (0) target = $region41
    $region40: #{qnetwork_forward.1} parent=1 // pred_region
      %45 = dma.done [#allocation3], 4096
    $region41: #{qnetwork_forward.1} parent=1 // pred_fallthru
      _
    %v47 = vld [vmem:[%s0] sm:$0xff]
    %v48 = vpack.c.bf16 %v47, %v47
    %v49 = vld [vmem:[%s1] sm:$0xff]
    %v50 = vpack.c.bf16 %v49, %v49
    %v51 = vld [vmem:[%s2] sm:$0xff]
    %v52 = vld [vmem:[%s2 + $0x8] sm:$0xff]
    %v53 = vld [vmem:[%s3] sm:$0xf]
    %v56 = vunpack.c.l.s4 1983009808
    %v57 = vunpack.c.0.s8 %v56
    %v58 = vlaneseq
    %v59 = vshrl.u32 %v58, 7
    %v60 = vsub.s32 %v57, %v59
    %v61 = vrot.slane %v53, %v60
    %v62 = vcombine.high %v61, %v61
    %vm63 = vcmask 31744
    %v65 = vsel %vm63, %v50, 0
    %vm67 = vcmask 1041408
    %v69 = vsel %vm67, %v61, 0
    %v72 = vsel %vm67, %v62, 0
    %74 = vmatprep.subr.bf16.mxu0 0
    %75 = vmatpush1.bf16.msra.mxu0 0
    %76 = vmatprep.subr.bf16.mxu0 0
    %77 = vmatpush1.bf16.msra.mxu0 0
    %78 = vmatprep.subr.bf16.mxu0 0
    %79 = vmatpush1.bf16.msra.mxu0 0
    %80 = vmatprep.subr.bf16.mxu0 0
    %81 = vmatpush1.bf16.msra.mxu0 0
    %82 = vmatprep.subr.bf16.mxu0 0
    %83 = vmatpush1.bf16.msra.mxu0 0
    %84 = vmatprep.subr.bf16.mxu0 0
    %85 = vmatpush1.bf16.msra.mxu0 0
    %86 = vmatprep.subr.bf16.mxu0 0
    %87 = vmatpush1.bf16.msra.mxu0 0
    %88 = vmatprep.subr.bf16.mxu0 %v72
    %89 = vmatpush1.bf16.msra.mxu0 %v69
    %90 = vmatprep.subr.bf16.mxu0 0
    %91 = vmatpush2.bf16.msra.mxu0 0
    %92 = vmatprep.subr.bf16.mxu0 0
    %93 = vmatpush2.bf16.msra.mxu0 0
    %94 = vmatprep.subr.bf16.mxu0 0
    %95 = vmatpush2.bf16.msra.mxu0 0
    %96 = vmatprep.subr.bf16.mxu0 0
    %97 = vmatpush2.bf16.msra.mxu0 0
    %98 = vmatprep.subr.bf16.mxu0 0
    %99 = vmatpush2.bf16.msra.mxu0 0
    %100 = vmatprep.subr.bf16.mxu0 0
    %101 = vmatpush2.bf16.msra.mxu0 0
    %102 = vmatprep.subr.bf16.mxu0 0
    %103 = vmatpush2.bf16.msra.mxu0 0
    %104 = vmatprep.subr.bf16.mxu0 0
    %105 = vmatpush2.bf16.msra.mxu0 0
    %106 = vmatprep.mubr.bf16.mxu0 0
    %107 = vmatmul.mubr.bf16.gmra.mxu0 %v65
    %v108 = vpop.f32.mrf.mxu0
    %v109 = vadd.f32 0.0, %v108
    %v110 = vpop.f32.mrf.mxu0
    %v111 = vadd.f32 0.0, %v110
    %v112 = vpop.f32.mrf.mxu0
    %v113 = vpop.f32.mrf.mxu0
    %114 = vdwg.mxu0
    %v117 = vunpack.c.l.b16 %v51
    %v118 = vunpack.c.h.b16 %v51
    %v119 = vunpack.c.l.b16 %v52
    %v120 = vunpack.c.h.b16 %v52
    %v121 = vpack.c.b16 %v119, %v117
    %v122 = vpack.c.b16 %v120, %v118
    %vm125 = vcmask 130048
    %v127 = vsel %vm125, %v48, 0
    %129 = vmatprep.subr.bf16.mxu0 0
    %130 = vmatpush1.bf16.msra.mxu0 0
    %131 = vmatprep.subr.bf16.mxu0 0
    %132 = vmatpush1.bf16.msra.mxu0 0
    %133 = vmatprep.subr.bf16.mxu0 0
    %134 = vmatpush1.bf16.msra.mxu0 0
    %135 = vmatprep.subr.bf16.mxu0 0
    %136 = vmatpush1.bf16.msra.mxu0 0
    %137 = vmatprep.subr.bf16.mxu0 0
    %138 = vmatpush1.bf16.msra.mxu0 0
    %139 = vmatprep.subr.bf16.mxu0 0
    %140 = vmatpush1.bf16.msra.mxu0 0
    %141 = vmatprep.subr.bf16.mxu0 0
    %142 = vmatpush1.bf16.msra.mxu0 0
    %143 = vmatprep.subr.bf16.mxu0 %v122
    %144 = vmatpush1.bf16.msra.mxu0 %v121
    %145 = vmatprep.subr.bf16.mxu0 0
    %146 = vmatpush2.bf16.msra.mxu0 0
    %147 = vmatprep.subr.bf16.mxu0 0
    %148 = vmatpush2.bf16.msra.mxu0 0
    %149 = vmatprep.subr.bf16.mxu0 0
    %150 = vmatpush2.bf16.msra.mxu0 0
    %151 = vmatprep.subr.bf16.mxu0 0
    %152 = vmatpush2.bf16.msra.mxu0 0
    %153 = vmatprep.subr.bf16.mxu0 0
    %154 = vmatpush2.bf16.msra.mxu0 0
    %155 = vmatprep.subr.bf16.mxu0 0
    %156 = vmatpush2.bf16.msra.mxu0 0
    %157 = vmatprep.subr.bf16.mxu0 0
    %158 = vmatpush2.bf16.msra.mxu0 0
    %159 = vmatprep.subr.bf16.mxu0 0
    %160 = vmatpush2.bf16.msra.mxu0 0
    %161 = vmatprep.mubr.bf16.mxu0 0
    %162 = vmatmul.mubr.bf16.gmra.mxu0 %v127
    %v163 = vpop.f32.mrf.mxu0
    %v164 = vadd.f32 %v109, %v163
    %v165 = vpop.f32.mrf.mxu0
    %v166 = vadd.f32 %v111, %v165
    %v167 = vpop.f32.mrf.mxu0
    %v168 = vpop.f32.mrf.mxu0
    %169 = vdwg.mxu0
    %v170 = vld [vmem:[%s4] sm:$0x3]
    %v172 = vlaneseq
    %v173 = vshrl.u32 %v172, 7
    %v174 = vsub.s32 0, %v173
    %v175 = vrot.slane %v170, %v174
    %v176 = vlaneseq
    %v177 = vshrl.u32 %v176, 7
    %v178 = vsub.s32 1, %v177
    %v179 = vrot.slane %v170, %v178
    %v182 = vadd.f32 %v164, %v175
    %v183 = vadd.f32 %v166, %v179
    %v184 = vmax.f32 %v182, 0.0
    %v185 = vmax.f32 %v183, 0.0
    %v186 = vpack.c.bf16 %v184, %v184
    %v187 = vpack.c.bf16 %v185, %v185
    %v188 = vld [vmem:[#allocation2] sm:$0xff]
    %v189 = vld [vmem:[#allocation2 + $0x8] sm:$0xff]
    %v190 = vld [vmem:[#allocation2 + $0x10] sm:$0xff]
    %v191 = vld [vmem:[#allocation2 + $0x18] sm:$0xff]
    %v192 = vld [vmem:[#allocation2 + $0x20] sm:$0xff]
    %v193 = vld [vmem:[#allocation2 + $0x28] sm:$0xff]
    %v194 = vld [vmem:[#allocation2 + $0x30] sm:$0xff]
    %v195 = vld [vmem:[#allocation2 + $0x38] sm:$0xff]
    %v196 = vld [vmem:[#allocation2 + $0x40] sm:$0xff]
    %v197 = vld [vmem:[#allocation2 + $0x48] sm:$0xff]
    %v198 = vld [vmem:[#allocation2 + $0x50] sm:$0xff]
    %v199 = vld [vmem:[#allocation2 + $0x58] sm:$0xff]
    %v200 = vld [vmem:[#allocation2 + $0x60] sm:$0xff]
    %v201 = vld [vmem:[#allocation2 + $0x68] sm:$0xff]
    %v202 = vld [vmem:[#allocation2 + $0x70] sm:$0xff]
    %v203 = vld [vmem:[#allocation2 + $0x78] sm:$0xff]
    %v204 = vld [vmem:[#allocation2 + $0x80] sm:$0xff]
    %v205 = vld [vmem:[#allocation2 + $0x88] sm:$0xff]
    %v206 = vld [vmem:[#allocation2 + $0x90] sm:$0xff]
    %v207 = vld [vmem:[#allocation2 + $0x98] sm:$0xff]
    %v208 = vld [vmem:[#allocation2 + $0xa0] sm:$0xff]
    %v209 = vld [vmem:[#allocation2 + $0xa8] sm:$0xff]
    %v210 = vld [vmem:[#allocation2 + $0xb0] sm:$0xff]
    %v211 = vld [vmem:[#allocation2 + $0xb8] sm:$0xff]
    %v212 = vld [vmem:[#allocation2 + $0xc0] sm:$0xff]
    %v213 = vld [vmem:[#allocation2 + $0xc8] sm:$0xff]
    %v214 = vld [vmem:[#allocation2 + $0xd0] sm:$0xff]
    %v215 = vld [vmem:[#allocation2 + $0xd8] sm:$0xff]
    %v216 = vld [vmem:[#allocation2 + $0xe0] sm:$0xff]
    %v217 = vld [vmem:[#allocation2 + $0xe8] sm:$0xff]
    %v218 = vld [vmem:[#allocation2 + $0xf0] sm:$0xff]
    %v219 = vld [vmem:[#allocation2 + $0xf8] sm:$0xff]
    %v220 = vld [vmem:[%s6] sm:$0x3]
    %v222 = vlaneseq
    %v223 = vshrl.u32 %v222, 7
    %v224 = vsub.s32 0, %v223
    %v225 = vrot.slane %v220, %v224
    %v226 = vlaneseq
    %v227 = vshrl.u32 %v226, 7
    %v228 = vsub.s32 1, %v227
    %v229 = vrot.slane %v220, %v228
    %v264 = vunpack.c.l.b16 %v188
    %v265 = vunpack.c.h.b16 %v188
    %v266 = vunpack.c.l.b16 %v189
    %v267 = vunpack.c.h.b16 %v189
    %v268 = vunpack.c.l.b16 %v190
    %v269 = vunpack.c.h.b16 %v190
    %v270 = vunpack.c.l.b16 %v191
    %v271 = vunpack.c.h.b16 %v191
    %v272 = vunpack.c.l.b16 %v192
    %v273 = vunpack.c.h.b16 %v192
    %v274 = vunpack.c.l.b16 %v193
    %v275 = vunpack.c.h.b16 %v193
    %v276 = vunpack.c.l.b16 %v194
    %v277 = vunpack.c.h.b16 %v194
    %v278 = vunpack.c.l.b16 %v195
    %v279 = vunpack.c.h.b16 %v195
    %v280 = vunpack.c.l.b16 %v196
    %v281 = vunpack.c.h.b16 %v196
    %v282 = vunpack.c.l.b16 %v197
    %v283 = vunpack.c.h.b16 %v197
    %v284 = vunpack.c.l.b16 %v198
    %v285 = vunpack.c.h.b16 %v198
    %v286 = vunpack.c.l.b16 %v199
    %v287 = vunpack.c.h.b16 %v199
    %v288 = vunpack.c.l.b16 %v200
    %v289 = vunpack.c.h.b16 %v200
    %v290 = vunpack.c.l.b16 %v201
    %v291 = vunpack.c.h.b16 %v201
    %v292 = vunpack.c.l.b16 %v202
    %v293 = vunpack.c.h.b16 %v202
    %v294 = vunpack.c.l.b16 %v203
    %v295 = vunpack.c.h.b16 %v203
    %v296 = vunpack.c.l.b16 %v204
    %v297 = vunpack.c.h.b16 %v204
    %v298 = vunpack.c.l.b16 %v205
    %v299 = vunpack.c.h.b16 %v205
    %v300 = vunpack.c.l.b16 %v206
    %v301 = vunpack.c.h.b16 %v206
    %v302 = vunpack.c.l.b16 %v207
    %v303 = vunpack.c.h.b16 %v207
    %v304 = vunpack.c.l.b16 %v208
    %v305 = vunpack.c.h.b16 %v208
    %v306 = vunpack.c.l.b16 %v209
    %v307 = vunpack.c.h.b16 %v209
    %v308 = vunpack.c.l.b16 %v210
    %v309 = vunpack.c.h.b16 %v210
    %v310 = vunpack.c.l.b16 %v211
    %v311 = vunpack.c.h.b16 %v211
    %v312 = vunpack.c.l.b16 %v212
    %v313 = vunpack.c.h.b16 %v212
    %v314 = vunpack.c.l.b16 %v213
    %v315 = vunpack.c.h.b16 %v213
    %v316 = vunpack.c.l.b16 %v214
    %v317 = vunpack.c.h.b16 %v214
    %v318 = vunpack.c.l.b16 %v215
    %v319 = vunpack.c.h.b16 %v215
    %v320 = vunpack.c.l.b16 %v216
    %v321 = vunpack.c.h.b16 %v216
    %v322 = vunpack.c.l.b16 %v217
    %v323 = vunpack.c.h.b16 %v217
    %v324 = vunpack.c.l.b16 %v218
    %v325 = vunpack.c.h.b16 %v218
    %v326 = vunpack.c.l.b16 %v219
    %v327 = vunpack.c.h.b16 %v219
    %v328 = vpack.c.b16 %v266, %v264
    %v329 = vpack.c.b16 %v267, %v265
    %v330 = vpack.c.b16 %v270, %v268
    %v331 = vpack.c.b16 %v271, %v269
    %v332 = vpack.c.b16 %v274, %v272
    %v333 = vpack.c.b16 %v275, %v273
    %v334 = vpack.c.b16 %v278, %v276
    %v335 = vpack.c.b16 %v279, %v277
    %v336 = vpack.c.b16 %v282, %v280
    %v337 = vpack.c.b16 %v283, %v281
    %v338 = vpack.c.b16 %v286, %v284
    %v339 = vpack.c.b16 %v287, %v285
    %v340 = vpack.c.b16 %v290, %v288
    %v341 = vpack.c.b16 %v291, %v289
    %v342 = vpack.c.b16 %v294, %v292
    %v343 = vpack.c.b16 %v295, %v293
    %v344 = vpack.c.b16 %v298, %v296
    %v345 = vpack.c.b16 %v299, %v297
    %v346 = vpack.c.b16 %v302, %v300
    %v347 = vpack.c.b16 %v303, %v301
    %v348 = vpack.c.b16 %v306, %v304
    %v349 = vpack.c.b16 %v307, %v305
    %v350 = vpack.c.b16 %v310, %v308
    %v351 = vpack.c.b16 %v311, %v309
    %v352 = vpack.c.b16 %v314, %v312
    %v353 = vpack.c.b16 %v315, %v313
    %v354 = vpack.c.b16 %v318, %v316
    %v355 = vpack.c.b16 %v319, %v317
    %v356 = vpack.c.b16 %v322, %v320
    %v357 = vpack.c.b16 %v323, %v321
    %v358 = vpack.c.b16 %v326, %v324
    %v359 = vpack.c.b16 %v327, %v325
    %392 = vmatprep.subr.bf16.mxu0 %v343
    %393 = vmatpush1.bf16.msra.mxu0 %v342
    %394 = vmatprep.subr.bf16.mxu0 %v341
    %395 = vmatpush1.bf16.msra.mxu0 %v340
    %396 = vmatprep.subr.bf16.mxu0 %v339
    %397 = vmatpush1.bf16.msra.mxu0 %v338
    %398 = vmatprep.subr.bf16.mxu0 %v337
    %399 = vmatpush1.bf16.msra.mxu0 %v336
    %400 = vmatprep.subr.bf16.mxu0 %v335
    %401 = vmatpush1.bf16.msra.mxu0 %v334
    %402 = vmatprep.subr.bf16.mxu0 %v333
    %403 = vmatpush1.bf16.msra.mxu0 %v332
    %404 = vmatprep.subr.bf16.mxu0 %v331
    %405 = vmatpush1.bf16.msra.mxu0 %v330
    %406 = vmatprep.subr.bf16.mxu0 %v329
    %407 = vmatpush1.bf16.msra.mxu0 %v328
    %408 = vmatprep.subr.bf16.mxu0 %v359
    %409 = vmatpush2.bf16.msra.mxu0 %v358
    %410 = vmatprep.subr.bf16.mxu0 %v357
    %411 = vmatpush2.bf16.msra.mxu0 %v356
    %412 = vmatprep.subr.bf16.mxu0 %v355
    %413 = vmatpush2.bf16.msra.mxu0 %v354
    %414 = vmatprep.subr.bf16.mxu0 %v353
    %415 = vmatpush2.bf16.msra.mxu0 %v352
    %416 = vmatprep.subr.bf16.mxu0 %v351
    %417 = vmatpush2.bf16.msra.mxu0 %v350
    %418 = vmatprep.subr.bf16.mxu0 %v349
    %419 = vmatpush2.bf16.msra.mxu0 %v348
    %420 = vmatprep.subr.bf16.mxu0 %v347
    %421 = vmatpush2.bf16.msra.mxu0 %v346
    %422 = vmatprep.subr.bf16.mxu0 %v345
    %423 = vmatpush2.bf16.msra.mxu0 %v344
    %424 = vmatprep.mubr.bf16.mxu0 %v187
    %425 = vmatmul.mubr.bf16.gmra.mxu0 %v186
    %v426 = vpop.f32.mrf.mxu0
    %v427 = vadd.f32 %v225, %v426
    %v428 = vpop.f32.mrf.mxu0
    %v429 = vadd.f32 %v229, %v428
    %v430 = vpop.f32.mrf.mxu0
    %v431 = vpop.f32.mrf.mxu0
    %432 = vdwg.mxu0
    %v433 = vmax.f32 %v427, 0.0
    %v434 = vmax.f32 %v429, 0.0
    %v435 = vpack.c.bf16 %v433, %v433
    %v436 = vpack.c.bf16 %v434, %v434
    %v437 = vld [vmem:[%s7] sm:$0xf]
    %v438 = vld [vmem:[%s7 + $0x4] sm:$0xf]
    %v439 = vld [vmem:[%s7 + $0x8] sm:$0xf]
    %v440 = vld [vmem:[%s7 + $0xc] sm:$0xf]
    %v441 = vld [vmem:[%s7 + $0x10] sm:$0xf]
    %v442 = vld [vmem:[%s7 + $0x14] sm:$0xf]
    %v443 = vld [vmem:[%s7 + $0x18] sm:$0xf]
    %v444 = vld [vmem:[%s7 + $0x1c] sm:$0xf]
    %v445 = vld [vmem:[%s7 + $0x20] sm:$0xf]
    %v446 = vld [vmem:[%s7 + $0x24] sm:$0xf]
    %v447 = vld [vmem:[%s7 + $0x28] sm:$0xf]
    %v448 = vld [vmem:[%s7 + $0x2c] sm:$0xf]
    %v449 = vld [vmem:[%s7 + $0x30] sm:$0xf]
    %v450 = vld [vmem:[%s7 + $0x34] sm:$0xf]
    %v451 = vld [vmem:[%s7 + $0x38] sm:$0xf]
    %v452 = vld [vmem:[%s7 + $0x3c] sm:$0xf]
    %v453 = vld [vmem:[%s7 + $0x40] sm:$0xf]
    %v454 = vld [vmem:[%s7 + $0x44] sm:$0xf]
    %v455 = vld [vmem:[%s7 + $0x48] sm:$0xf]
    %v456 = vld [vmem:[%s7 + $0x4c] sm:$0xf]
    %v457 = vld [vmem:[%s7 + $0x50] sm:$0xf]
    %v458 = vld [vmem:[%s7 + $0x54] sm:$0xf]
    %v459 = vld [vmem:[%s7 + $0x58] sm:$0xf]
    %v460 = vld [vmem:[%s7 + $0x5c] sm:$0xf]
    %v461 = vld [vmem:[%s7 + $0x60] sm:$0xf]
    %v462 = vld [vmem:[%s7 + $0x64] sm:$0xf]
    %v463 = vld [vmem:[%s7 + $0x68] sm:$0xf]
    %v464 = vld [vmem:[%s7 + $0x6c] sm:$0xf]
    %v465 = vld [vmem:[%s7 + $0x70] sm:$0xf]
    %v466 = vld [vmem:[%s7 + $0x74] sm:$0xf]
    %v467 = vld [vmem:[%s7 + $0x78] sm:$0xf]
    %v468 = vld [vmem:[%s7 + $0x7c] sm:$0xf]
    %v469 = vld [vmem:[%s8] sm:$0x1]
    %v471 = vlaneseq
    %v472 = vshrl.u32 %v471, 7
    %v473 = vsub.s32 0, %v472
    %v474 = vrot.slane %v469, %v473
    %v508 = vunpack.c.l.b16 %v437
    %v509 = vunpack.c.l.b16 %v438
    %v510 = vunpack.c.l.b16 %v439
    %v511 = vunpack.c.l.b16 %v440
    %v512 = vunpack.c.l.b16 %v441
    %v513 = vunpack.c.l.b16 %v442
    %v514 = vunpack.c.l.b16 %v443
    %v515 = vunpack.c.l.b16 %v444
    %v516 = vunpack.c.l.b16 %v445
    %v517 = vunpack.c.l.b16 %v446
    %v518 = vunpack.c.l.b16 %v447
    %v519 = vunpack.c.l.b16 %v448
    %v520 = vunpack.c.l.b16 %v449
    %v521 = vunpack.c.l.b16 %v450
    %v522 = vunpack.c.l.b16 %v451
    %v523 = vunpack.c.l.b16 %v452
    %v524 = vunpack.c.l.b16 %v453
    %v525 = vunpack.c.l.b16 %v454
    %v526 = vunpack.c.l.b16 %v455
    %v527 = vunpack.c.l.b16 %v456
    %v528 = vunpack.c.l.b16 %v457
    %v529 = vunpack.c.l.b16 %v458
    %v530 = vunpack.c.l.b16 %v459
    %v531 = vunpack.c.l.b16 %v460
    %v532 = vunpack.c.l.b16 %v461
    %v533 = vunpack.c.l.b16 %v462
    %v534 = vunpack.c.l.b16 %v463
    %v535 = vunpack.c.l.b16 %v464
    %v536 = vunpack.c.l.b16 %v465
    %v537 = vunpack.c.l.b16 %v466
    %v538 = vunpack.c.l.b16 %v467
    %v539 = vunpack.c.l.b16 %v468
    %v540 = vpack.c.b16 %v509, %v508
    %v541 = vpack.c.b16 %v511, %v510
    %v542 = vpack.c.b16 %v513, %v512
    %v543 = vpack.c.b16 %v515, %v514
    %v544 = vpack.c.b16 %v517, %v516
    %v545 = vpack.c.b16 %v519, %v518
    %v546 = vpack.c.b16 %v521, %v520
    %v547 = vpack.c.b16 %v523, %v522
    %v548 = vpack.c.b16 %v525, %v524
    %v549 = vpack.c.b16 %v527, %v526
    %v550 = vpack.c.b16 %v529, %v528
    %v551 = vpack.c.b16 %v531, %v530
    %v552 = vpack.c.b16 %v533, %v532
    %v553 = vpack.c.b16 %v535, %v534
    %v554 = vpack.c.b16 %v537, %v536
    %v555 = vpack.c.b16 %v539, %v538
    %572 = vmatprep.subr.bf16.mxu0 0
    %573 = vmatpush1.bf16.msra.mxu0 %v547
    %574 = vmatprep.subr.bf16.mxu0 0
    %575 = vmatpush1.bf16.msra.mxu0 %v546
    %576 = vmatprep.subr.bf16.mxu0 0
    %577 = vmatpush1.bf16.msra.mxu0 %v545
    %578 = vmatprep.subr.bf16.mxu0 0
    %579 = vmatpush1.bf16.msra.mxu0 %v544
    %580 = vmatprep.subr.bf16.mxu0 0
    %581 = vmatpush1.bf16.msra.mxu0 %v543
    %582 = vmatprep.subr.bf16.mxu0 0
    %583 = vmatpush1.bf16.msra.mxu0 %v542
    %584 = vmatprep.subr.bf16.mxu0 0
    %585 = vmatpush1.bf16.msra.mxu0 %v541
    %586 = vmatprep.subr.bf16.mxu0 0
    %587 = vmatpush1.bf16.msra.mxu0 %v540
    %588 = vmatprep.subr.bf16.mxu0 0
    %589 = vmatpush2.bf16.msra.mxu0 %v555
    %590 = vmatprep.subr.bf16.mxu0 0
    %591 = vmatpush2.bf16.msra.mxu0 %v554
    %592 = vmatprep.subr.bf16.mxu0 0
    %593 = vmatpush2.bf16.msra.mxu0 %v553
    %594 = vmatprep.subr.bf16.mxu0 0
    %595 = vmatpush2.bf16.msra.mxu0 %v552
    %596 = vmatprep.subr.bf16.mxu0 0
    %597 = vmatpush2.bf16.msra.mxu0 %v551
    %598 = vmatprep.subr.bf16.mxu0 0
    %599 = vmatpush2.bf16.msra.mxu0 %v550
    %600 = vmatprep.subr.bf16.mxu0 0
    %601 = vmatpush2.bf16.msra.mxu0 %v549
    %602 = vmatprep.subr.bf16.mxu0 0
    %603 = vmatpush2.bf16.msra.mxu0 %v548
    %604 = vmatprep.mubr.bf16.mxu0 %v436
    %605 = vmatmul.mubr.bf16.gmra.mxu0 %v435
    %v606 = vpop.f32.mrf.mxu0
    %v607 = vadd.f32 %v474, %v606
    %v608 = vpop.f32.mrf.mxu0
    %v609 = vpop.f32.mrf.mxu0
    %v610 = vpop.f32.mrf.mxu0
    %611 = vdwg.mxu0
    %vm612 = vcmask 64512
    %613 = vst.msk [vmem:[%s9] sm:$0xff] %vm612, %v607
    // Predicated region
    $region42: #{qnetwork_forward.1} parent=1 // pred_check
      _
    $region43: #{qnetwork_forward.1} parent=1 // pred_check_branch
      %615 = sbr.rel (0) target = $region45
    $region44: #{qnetwork_forward.1} parent=1 // pred_region
      _
    $region45: #{qnetwork_forward.1} parent=1 // pred_fallthru
      _
    // Predicated region
    $region46: #{qnetwork_forward.1} parent=1 // pred_check
      _
    $region47: #{qnetwork_forward.1} parent=1 // pred_check_branch
      %617 = sbr.rel (0) target = $region49
    $region48: #{qnetwork_forward.1} parent=1 // pred_region
      _
    $region49: #{qnetwork_forward.1} parent=1 // pred_fallthru
      _
    %618 = vsyncpa [#allocation3], 1

</llo_original>
